<compile_context>
chip_gen: v6e
topology: v6e:2x2x1
jax: 0.10.0
libtpu: 0.0.40
codegen_flags: <defaults>
</compile_context>

<pallas_src>
import functools
import math

import jax
import jax.numpy as jnp
from jax.experimental import pallas as pl
from jax.experimental.pallas import tpu as pltpu


# --------------------------- hardware-aware knobs ------------------------------

def _default_vmem_limit():
    """~3/4 of physical VMEM (96 MiB on v5e/v6e, 48 MiB on v7x); safe fallback."""
    try:
        cap = pltpu.get_tpu_info().vmem_capacity_bytes
        return int(cap * 3 // 4)
    except Exception:
        return 48 * 1024 * 1024


_VMEM_LIMIT = _default_vmem_limit()


def _tile(dim, cap, aligns):
    """Largest divisor of `dim` <= cap preferring the alignments in order.
    Falls back to the full dim (always a legal block) rather than an unaligned tile."""
    if dim <= cap:
        return dim
    for align in aligns:
        start = cap - cap % align
        for t in range(start, 0, -align):
            if dim % t == 0:
                return t
    return dim


# ----------------------------- dense (tiled matmul) ----------------------------

def _dense_kernel(x_ref, w_ref, b_ref, *rest, activation, fuse_ln, eps):
    """K-accumulating matmul with fused bias(/GELU)(/residual+LayerNorm) epilogue.

    x: [tm, tk] bf16, w: [tk, tn] bf16, b: [1, tn] f32.
    If fuse_ln: rest = (res_ref, gamma_ref, beta_ref, o_ref, acc_ref) and tn == N.
    Else:       rest = (o_ref, acc_ref).
    """
    if fuse_ln:
        res_ref, g_ref, bt_ref, o_ref, acc_ref = rest
    else:
        o_ref, acc_ref = rest

    k = pl.program_id(2)

    @pl.when(k == 0)
    def _():
        acc_ref[...] = jnp.zeros_like(acc_ref)

    acc_ref[...] += jnp.dot(x_ref[...], w_ref[...],
                            preferred_element_type=jnp.float32)

    @pl.when(k == pl.num_programs(2) - 1)
    def _():
        y = acc_ref[...] + b_ref[...].astype(jnp.float32)
        if activation == "gelu":
            # TODO(synk): tanh-approx GELU; exact-erf GELU differs at ~1e-3 level.
            c = jnp.float32(math.sqrt(2.0 / math.pi))
            y = 0.5 * y * (1.0 + jnp.tanh(c * (y + 0.044715 * y * y * y)))
        if fuse_ln:
            y = y + res_ref[...].astype(jnp.float32)
            mean = jnp.mean(y, axis=-1, keepdims=True)
            var = jnp.mean((y - mean) ** 2, axis=-1, keepdims=True)
            y = (y - mean) * jax.lax.rsqrt(var + eps)
            y = y * g_ref[...].astype(jnp.float32) + bt_ref[...].astype(jnp.float32)
        o_ref[...] = y.astype(o_ref.dtype)


def dense(x, w, b, *, activation=None, residual=None, ln_gamma=None, ln_beta=None,
          ln_eps=1e-12, out_dtype=None):
    """y = act(x @ w + b), optionally fused with residual-add + LayerNorm epilogue."""
    M, K = x.shape
    K2, N = w.shape
    assert K == K2
    fuse_ln = residual is not None
    out_dtype = out_dtype or x.dtype

    # Big M tile -> fewer HBM re-streams of the weight matrix (dominant cost).
    tm_cap = 1024
    if fuse_ln and M > 8:
        # LN-fused matmuls have a single j block; keep >= 2 M blocks so both v7x
        # TensorCores have work.
        tm_cap = min(tm_cap, max(8, M // 2))
    tm = _tile(M, tm_cap, aligns=(8,))
    # 256-aligned K/N tiles fill the 2x256x256 MXU on v6e/v7x; 128-aligned ok on v5e.
    tk = _tile(K, 512, aligns=(256, 128))
    tn = N if fuse_ln else _tile(N, 1152, aligns=(256, 128))   # LN needs the full row
    grid = (M // tm, N // tn, K // tk)

    in_specs = [
        pl.BlockSpec((tm, tk), lambda i, j, k: (i, k)),
        pl.BlockSpec((tk, tn), lambda i, j, k: (k, j)),
        pl.BlockSpec((1, tn), lambda i, j, k: (0, j)),
    ]
    inputs = [x, w, b.reshape(1, N)]
    bytes_accessed = int(x.nbytes + w.nbytes + b.nbytes
                         + M * N * jnp.dtype(out_dtype).itemsize)
    if fuse_ln:
        in_specs += [
            pl.BlockSpec((tm, tn), lambda i, j, k: (i, j)),
            pl.BlockSpec((1, tn), lambda i, j, k: (0, j)),
            pl.BlockSpec((1, tn), lambda i, j, k: (0, j)),
        ]
        inputs += [residual, ln_gamma.reshape(1, N), ln_beta.reshape(1, N)]
        bytes_accessed += int(residual.nbytes)

    cost = pl.CostEstimate(
        flops=int(2 * M * N * K),
        transcendentals=int(M * N) if activation == "gelu" else 0,
        bytes_accessed=bytes_accessed,
    )

    return pl.pallas_call(
        functools.partial(_dense_kernel, activation=activation,
                          fuse_ln=fuse_ln, eps=ln_eps),
        grid=grid,
        in_specs=in_specs,
        out_specs=pl.BlockSpec((tm, tn), lambda i, j, k: (i, j)),
        out_shape=jax.ShapeDtypeStruct((M, N), out_dtype),
        scratch_shapes=[pltpu.VMEM((tm, tn), jnp.float32)],
        compiler_params=pltpu.CompilerParams(
            dimension_semantics=("parallel", "parallel", "arbitrary"),
            vmem_limit_bytes=_VMEM_LIMIT),
        cost_estimate=cost,
    )(*inputs)


# -------------------- embedding add + LayerNorm (fused) ------------------------

def _embed_ln_kernel(word_ref, seg_ref, pos_ref, type_ref, g_ref, b_ref, o_ref, *, eps):
    # word: [1,S,H] f32 gathered word embeddings; seg: [1,S,1] int32;
    # pos: [S,H] f32; type: [TV,H] f32 (tiny); g/b: [1,H] f32.
    x = word_ref[0] + pos_ref[...]                       # [S, H] f32
    seg = seg_ref[0]                                     # [S, 1] int32
    for t in range(type_ref.shape[0]):                   # tiny type vocab: in-kernel lookup
        x = x + jnp.where(seg == t, type_ref[t:t + 1, :], jnp.float32(0.0))
    mean = jnp.mean(x, axis=-1, keepdims=True)
    var = jnp.mean((x - mean) ** 2, axis=-1, keepdims=True)
    y = (x - mean) * jax.lax.rsqrt(var + eps)
    o_ref[0] = (y * g_ref[...] + b_ref[...]).astype(o_ref.dtype)


def embed_layernorm(word_g, segment_ids, pos_emb, type_emb, gamma, beta, *,
                    eps=1e-12, out_dtype=jnp.bfloat16):
    B, S, H = word_g.shape
    TV = type_emb.shape[0]
    seg3 = segment_ids.astype(jnp.int32).reshape(B, S, 1)
    return pl.pallas_call(
        functools.partial(_embed_ln_kernel, eps=eps),
        grid=(B,),
        in_specs=[pl.BlockSpec((1, S, H), lambda b: (b, 0, 0)),
                  pl.BlockSpec((1, S, 1), lambda b: (b, 0, 0)),
                  pl.BlockSpec((S, H), lambda b: (0, 0)),
                  pl.BlockSpec((TV, H), lambda b: (0, 0)),
                  pl.BlockSpec((1, H), lambda b: (0, 0)),
                  pl.BlockSpec((1, H), lambda b: (0, 0))],
        out_specs=pl.BlockSpec((1, S, H), lambda b: (b, 0, 0)),
        out_shape=jax.ShapeDtypeStruct((B, S, H), out_dtype),
        compiler_params=pltpu.CompilerParams(
            dimension_semantics=("parallel",), vmem_limit_bytes=_VMEM_LIMIT),
    )(word_g, seg3, pos_emb, type_emb, gamma.reshape(1, H), beta.reshape(1, H))


# ------------------------------- attention --------------------------------------

def _attention_kernel(q_ref, kv_ref, m_ref, o_ref, ctx_ref, *, num_heads, scale):
    # q_ref:  [1, tq, 3H] (only the Q third is used), kv_ref: [1, S, 3H],
    # m_ref:  [1, 1, S] additive mask, ctx_ref: [tq, H] f32 scratch.
    H3 = kv_ref.shape[2]
    H = H3 // 3
    Dh = H // num_heads
    mask = m_ref[0].astype(jnp.float32)                               # [1, S]
    for h in range(num_heads):
        # 1/sqrt(Dh) folded into q: tq*Dh multiplies instead of tq*S per head.
        q = q_ref[0, :, h * Dh:(h + 1) * Dh] * scale                  # [tq, Dh] bf16
        k = kv_ref[0, :, H + h * Dh:H + (h + 1) * Dh]                 # [S, Dh]  bf16
        v = kv_ref[0, :, 2 * H + h * Dh:2 * H + (h + 1) * Dh]         # [S, Dh]  bf16
        # contract on Dh directly (no materialized k.T / XLU transpose)
        s = jax.lax.dot_general(q, k, (((1,), (1,)), ((), ())),
                                preferred_element_type=jnp.float32) + mask
        s = s - jnp.max(s, axis=-1, keepdims=True)
        p = jnp.exp(s)
        inv = pl.reciprocal(jnp.sum(p, axis=-1, keepdims=True), approx=True)
        p = (p * inv).astype(v.dtype)
        ctx_ref[:, h * Dh:(h + 1) * Dh] = jnp.dot(p, v,
                                                  preferred_element_type=jnp.float32)
    # single lane-dense cast + store of the whole [tq, H] context slab
    o_ref[0] = ctx_ref[...].astype(o_ref.dtype)


def attention(qkv, add_mask, *, num_heads, scale):
    """qkv: [B, S, 3H] fused projections; add_mask: [B, 1, S]; returns [B, S, H].

    Query-block tiled: grid=(B, S//tq); K/V stay whole-sequence resident per batch.
    TODO(synk): stream K/V blocks flash-style (online softmax) for very long S.
    """
    B, S, H3 = qkv.shape
    H = H3 // 3
    Dh = H // num_heads
    tq = _tile(S, 256, aligns=(8,))
    cost = pl.CostEstimate(
        flops=int(4 * B * num_heads * S * S * Dh),
        transcendentals=int(B * num_heads * S * S),
        bytes_accessed=int(2 * qkv.nbytes + add_mask.nbytes
                           + B * S * H * qkv.dtype.itemsize),
    )
    return pl.pallas_call(
        functools.partial(_attention_kernel, num_heads=num_heads, scale=scale),
        grid=(B, S // tq),
        in_specs=[pl.BlockSpec((1, tq, H3), lambda b, qi: (b, qi, 0)),   # Q rows
                  pl.BlockSpec((1, S, H3), lambda b, qi: (b, 0, 0)),     # K/V (whole seq)
                  pl.BlockSpec((1, 1, S), lambda b, qi: (b, 0, 0))],     # additive mask
        out_specs=pl.BlockSpec((1, tq, H), lambda b, qi: (b, qi, 0)),
        out_shape=jax.ShapeDtypeStruct((B, S, H), qkv.dtype),
        scratch_shapes=[pltpu.VMEM((tq, H), jnp.float32)],
        compiler_params=pltpu.CompilerParams(
            dimension_semantics=("parallel", "parallel"),
            vmem_limit_bytes=_VMEM_LIMIT),
        cost_estimate=cost,
    )(qkv, qkv, add_mask)


# --------------------------- Parameter construction ----------------------------

def init_params(key, cfg):
    H = cfg["hidden_size"]
    I = cfg["intermediate_size"]
    NL = cfg["num_labels"]
    NL_pad = ((NL + 255) // 256) * 256   # 256 output lanes: full MXU column on v6e/v7x
    init_range = cfg["initializer_range"]
    wdt = jnp.bfloat16   # matmul weights in bf16; LN params / biases stay f32

    def nrm(k, shape):
        return jax.random.normal(k, shape, dtype=jnp.float32) * init_range

    n_keys = 4 + 6 * cfg["num_layers"]
    keys = list(jax.random.split(key, n_keys))
    ki = iter(keys)

    word_emb = nrm(next(ki), (cfg["vocab_size"], H))
    word_emb = word_emb.at[cfg["pad_idx"]].set(0.0)   # padding_idx row zeroed
    params = {
        "word_emb": word_emb,
        "pos_emb": nrm(next(ki), (cfg["max_position_embeddings"], H)),
        "type_emb": nrm(next(ki), (cfg["type_vocab_size"], H)),
        "emb_ln_g": jnp.ones((H,), jnp.float32),
        "emb_ln_b": jnp.zeros((H,), jnp.float32),
        "layers": [],
    }
    for _ in range(cfg["num_layers"]):
        wq = nrm(next(ki), (H, H))
        wk = nrm(next(ki), (H, H))
        wv = nrm(next(ki), (H, H))
        layer = {
            "wqkv": jnp.concatenate([wq, wk, wv], axis=1).astype(wdt),   # [H, 3H]
            "bqkv": jnp.zeros((3 * H,), jnp.float32),
            "wo": nrm(next(ki), (H, H)).astype(wdt),
            "bo": jnp.zeros((H,), jnp.float32),
            "ln1_g": jnp.ones((H,), jnp.float32), "ln1_b": jnp.zeros((H,), jnp.float32),
            "wi": nrm(next(ki), (H, I)).astype(wdt),
            "bi": jnp.zeros((I,), jnp.float32),
            "wf": nrm(next(ki), (I, H)).astype(wdt),
            "bf": jnp.zeros((H,), jnp.float32),
            "ln2_g": jnp.ones((H,), jnp.float32), "ln2_b": jnp.zeros((H,), jnp.float32),
        }
        params["layers"].append(layer)

    # classifier: torch.fmod(randn, initializer_range), bias zeros; weight zero-padded
    # to a 256-lane output so the final store is lane-dense and fills the MXU column.
    cls_w = jnp.fmod(jax.random.normal(next(ki), (H, NL), jnp.float32), init_range)
    params["cls_w_pad"] = (jnp.zeros((H, NL_pad), jnp.float32)
                           .at[:, :NL].set(cls_w).astype(wdt))
    params["cls_b_pad"] = jnp.zeros((NL_pad,), jnp.float32)
    return params


# ------------------------------- Forward pass -----------------------------------

def token_classification_forward(params, input_ids, segment_ids, input_mask, cfg):
    B, S = input_ids.shape
    H = cfg["hidden_size"]
    NH = cfg["num_heads"]
    Dh = H // NH
    M = B * S

    # word-embedding gather in XLA (table too big for VMEM); position add, token-type
    # lookup and embedding LayerNorm fused into one Pallas kernel (no [B,S,H] HBM
    # round trip for the summed embedding tensor).
    word_g = jnp.take(params["word_emb"], input_ids, axis=0)            # [B,S,H] f32
    h = embed_layernorm(word_g, segment_ids, params["pos_emb"][:S],
                        params["type_emb"], params["emb_ln_g"], params["emb_ln_b"],
                        out_dtype=jnp.bfloat16).reshape(M, H)            # [M,H] bf16

    # additive attention mask kept at [B, 1, S] (not duplicated per head)
    add_mask = ((1.0 - input_mask.astype(jnp.float32)) * -10000.0).reshape(B, 1, S)
    scale = 1.0 / math.sqrt(Dh)

    for layer in params["layers"]:
        # fused Q|K|V projection: one MXU pass, one read of h
        qkv = dense(h, layer["wqkv"], layer["bqkv"])                     # [M,3H]
        ctx = attention(qkv.reshape(B, S, 3 * H), add_mask,
                        num_heads=NH, scale=scale).reshape(M, H)         # [M,H]
        # attention output proj fused with residual + LayerNorm1
        h = dense(ctx, layer["wo"], layer["bo"],
                  residual=h, ln_gamma=layer["ln1_g"], ln_beta=layer["ln1_b"])
        # FFN: intermediate with fused bias+GELU, output fused with residual + LN2
        inter = dense(h, layer["wi"], layer["bi"], activation="gelu")    # [M,I]
        h = dense(inter, layer["wf"], layer["bf"],
                  residual=h, ln_gamma=layer["ln2_g"], ln_beta=layer["ln2_b"])

    # self.dropout(hidden_state): identity in eval/inference.
    # TODO(synk): training-mode dropout (hidden_dropout_prob) not implemented.
    logits = dense(h, params["cls_w_pad"], params["cls_b_pad"],
                   out_dtype=jnp.float32)                                # [M, 256]
    logits = logits[:, :cfg["num_labels"]]
    return logits.reshape(B, S, cfg["num_labels"])


# ----------------------------------- Main ----------------------------------------

if __name__ == "__main__":
    cfg = dict(
        vocab_size=50,
        hidden_size=32,
        num_layers=2,
        num_heads=2,
        intermediate_size=64,
        max_position_embeddings=32,
        type_vocab_size=2,
        initializer_range=0.02,
        num_labels=5,
        pad_idx=0,
    )
    B, S = 2, 8

    key = jax.random.PRNGKey(0)
    k_param, k_ids, k_seg = jax.random.split(key, 3)
    params = init_params(k_param, cfg)

    input_ids = jax.random.randint(k_ids, (B, S), 1, cfg["vocab_size"], dtype=jnp.int32)
    # pad the last two tokens of the second sequence
    input_ids = input_ids.at[1, -2:].set(cfg["pad_idx"])
    segment_ids = jnp.concatenate(
        [jnp.zeros((B, S // 2), jnp.int32), jnp.ones((B, S // 2), jnp.int32)], axis=1)
    input_mask = jnp.ones((B, S), jnp.int32).at[1, -2:].set(0)

    logits = token_classification_forward(params, input_ids, segment_ids, input_mask, cfg)
    logits = jax.block_until_ready(logits)

    assert logits.shape == (B, S, cfg["num_labels"])
    assert bool(jnp.all(jnp.isfinite(logits.astype(jnp.float32))))
    print("KERNEL_OK")
</pallas_src>

<mosaic_0001>
module attributes {stable_mosaic.version = 11 : i64} {
  func.func @_embed_ln_kernel(%arg0: i32, %arg1: memref<1x8x32xf32, #tpu.memory_space<vmem>>, %arg2: memref<1x8x1xi32, #tpu.memory_space<vmem>>, %arg3: memref<8x32xf32, #tpu.memory_space<vmem>>, %arg4: memref<2x32xf32, #tpu.memory_space<vmem>>, %arg5: memref<1x32xf32, #tpu.memory_space<vmem>>, %arg6: memref<1x32xf32, #tpu.memory_space<vmem>>, %arg7: memref<1x8x32xbf16, #tpu.memory_space<vmem>>) attributes {dimension_semantics = [#tpu.dimension_semantics<parallel>], iteration_bounds = array<i64: 2>, scalar_prefetch = 0 : i64, scratch_operands = 0 : i64, tpu.core_type = #tpu.core_type<tc>, window_params = [{transform_indices = @transform_0, window_bounds = array<i64: 1, 8, 32>}, {transform_indices = @transform_1, window_bounds = array<i64: 1, 8, 1>}, {pipeline_mode = #tpu.pipeline_mode<synchronous>, transform_indices = @transform_2, window_bounds = array<i64: 8, 32>}, {pipeline_mode = #tpu.pipeline_mode<synchronous>, transform_indices = @transform_3, window_bounds = array<i64: 2, 32>}, {pipeline_mode = #tpu.pipeline_mode<synchronous>, transform_indices = @transform_4, window_bounds = array<i64: 1, 32>}, {pipeline_mode = #tpu.pipeline_mode<synchronous>, transform_indices = @transform_5, window_bounds = array<i64: 1, 32>}, {transform_indices = @transform_6, window_bounds = array<i64: 1, 8, 32>}]} {
    %c0 = arith.constant 0 : index
    %c0_0 = arith.constant 0 : index
    %c0_1 = arith.constant 0 : index
    %0 = vector.load %arg1[%c0, %c0_0, %c0_1] : memref<1x8x32xf32, #tpu.memory_space<vmem>>, vector<1x8x32xf32>
    %1 = vector.shape_cast %0 : vector<1x8x32xf32> to vector<8x32xf32>
    %c0_2 = arith.constant 0 : index
    %c0_3 = arith.constant 0 : index
    %2 = vector.load %arg3[%c0_2, %c0_3] : memref<8x32xf32, #tpu.memory_space<vmem>>, vector<8x32xf32>
    %3 = arith.addf %1, %2 : vector<8x32xf32>
    %c0_4 = arith.constant 0 : index
    %c0_5 = arith.constant 0 : index
    %c0_6 = arith.constant 0 : index
    %4 = vector.load %arg2[%c0_4, %c0_5, %c0_6] : memref<1x8x1xi32, #tpu.memory_space<vmem>>, vector<1x8x1xi32>
    %5 = vector.shape_cast %4 : vector<1x8x1xi32> to vector<8x1xi32>
    %c0_i32 = arith.constant 0 : i32
    %6 = vector.broadcast %c0_i32 : i32 to vector<8x1xi32>
    %7 = arith.cmpi eq, %5, %6 : vector<8x1xi32>
    %c0_7 = arith.constant 0 : index
    %c0_8 = arith.constant 0 : index
    %8 = vector.load %arg4[%c0_7, %c0_8] : memref<2x32xf32, #tpu.memory_space<vmem>>, vector<1x32xf32>
    %cst = arith.constant 0.000000e+00 : f32
    %9 = vector.shape_cast %7 : vector<8x1xi1> to vector<8x1xi1>
    %10 = vector.broadcast %9 : vector<8x1xi1> to vector<8x32xi1>
    %11 = vector.shape_cast %8 : vector<1x32xf32> to vector<1x32xf32>
    %12 = vector.broadcast %11 : vector<1x32xf32> to vector<8x32xf32>
    %13 = vector.broadcast %cst : f32 to vector<8x32xf32>
    %14 = arith.select %10, %12, %13 : vector<8x32xi1>, vector<8x32xf32>
    %15 = arith.addf %3, %14 : vector<8x32xf32>
    %c1_i32 = arith.constant 1 : i32
    %16 = vector.broadcast %c1_i32 : i32 to vector<8x1xi32>
    %17 = arith.cmpi eq, %5, %16 : vector<8x1xi32>
    %c1 = arith.constant 1 : index
    %c0_9 = arith.constant 0 : index
    %18 = vector.load %arg4[%c1, %c0_9] : memref<2x32xf32, #tpu.memory_space<vmem>>, vector<1x32xf32>
    %cst_10 = arith.constant 0.000000e+00 : f32
    %19 = vector.shape_cast %17 : vector<8x1xi1> to vector<8x1xi1>
    %20 = vector.broadcast %19 : vector<8x1xi1> to vector<8x32xi1>
    %21 = vector.shape_cast %18 : vector<1x32xf32> to vector<1x32xf32>
    %22 = vector.broadcast %21 : vector<1x32xf32> to vector<8x32xf32>
    %23 = vector.broadcast %cst_10 : f32 to vector<8x32xf32>
    %24 = arith.select %20, %22, %23 : vector<8x32xi1>, vector<8x32xf32>
    %25 = arith.addf %15, %24 : vector<8x32xf32>
    %cst_11 = arith.constant dense<0.000000e+00> : vector<8xf32>
    %26 = vector.multi_reduction <add>, %25, %cst_11 [1] : vector<8x32xf32> to vector<8xf32>
    %27 = vector.shape_cast %26 : vector<8xf32> to vector<8x1xf32>
    %cst_12 = arith.constant 3.200000e+01 : f32
    %28 = vector.broadcast %cst_12 : f32 to vector<8x1xf32>
    %29 = arith.divf %27, %28 : vector<8x1xf32>
    %30 = vector.broadcast %29 : vector<8x1xf32> to vector<8x32xf32>
    %31 = arith.subf %25, %30 : vector<8x32xf32>
    %32 = arith.mulf %31, %31 : vector<8x32xf32>
    %cst_13 = arith.constant dense<0.000000e+00> : vector<8xf32>
    %33 = vector.multi_reduction <add>, %32, %cst_13 [1] : vector<8x32xf32> to vector<8xf32>
    %34 = vector.shape_cast %33 : vector<8xf32> to vector<8x1xf32>
    %cst_14 = arith.constant 3.200000e+01 : f32
    %35 = vector.broadcast %cst_14 : f32 to vector<8x1xf32>
    %36 = arith.divf %34, %35 : vector<8x1xf32>
    %37 = vector.broadcast %29 : vector<8x1xf32> to vector<8x32xf32>
    %38 = arith.subf %25, %37 : vector<8x32xf32>
    %cst_15 = arith.constant 9.99999996E-13 : f32
    %39 = vector.broadcast %cst_15 : f32 to vector<8x1xf32>
    %40 = arith.addf %36, %39 : vector<8x1xf32>
    %41 = math.rsqrt %40 : vector<8x1xf32>
    %42 = vector.broadcast %41 : vector<8x1xf32> to vector<8x32xf32>
    %43 = arith.mulf %38, %42 : vector<8x32xf32>
    %c0_16 = arith.constant 0 : index
    %c0_17 = arith.constant 0 : index
    %44 = vector.load %arg5[%c0_16, %c0_17] : memref<1x32xf32, #tpu.memory_space<vmem>>, vector<1x32xf32>
    %45 = vector.broadcast %44 : vector<1x32xf32> to vector<8x32xf32>
    %46 = arith.mulf %43, %45 : vector<8x32xf32>
    %c0_18 = arith.constant 0 : index
    %c0_19 = arith.constant 0 : index
    %47 = vector.load %arg6[%c0_18, %c0_19] : memref<1x32xf32, #tpu.memory_space<vmem>>, vector<1x32xf32>
    %48 = vector.broadcast %47 : vector<1x32xf32> to vector<8x32xf32>
    %49 = arith.addf %46, %48 : vector<8x32xf32>
    %50 = arith.truncf %49 : vector<8x32xf32> to vector<8x32xbf16>
    %c0_20 = arith.constant 0 : index
    %c0_21 = arith.constant 0 : index
    %c0_22 = arith.constant 0 : index
    %51 = vector.load %arg7[%c0_20, %c0_21, %c0_22] : memref<1x8x32xbf16, #tpu.memory_space<vmem>>, vector<1x8x32xbf16>
    %52 = vector.shape_cast %51 : vector<1x8x32xbf16> to vector<8x32xbf16>
    %53 = vector.shape_cast %50 : vector<8x32xbf16> to vector<1x8x32xbf16>
    tpu.vector_store %arg7[%c0_20, %c0_21, %c0_22], %53 {strides = array<i32>} : memref<1x8x32xbf16, #tpu.memory_space<vmem>>, vector<1x8x32xbf16>,
    return
  }
  func.func @transform_0(%arg0: i32) -> (i32, i32, i32) {
    %c0_i32 = arith.constant 0 : i32
    %c0_i32_0 = arith.constant 0 : i32
    %c0_i32_1 = arith.constant 0 : i32
    return %arg0, %c0_i32, %c0_i32_0 : i32, i32, i32
  }
  func.func @transform_1(%arg0: i32) -> (i32, i32, i32) {
    %c0_i32 = arith.constant 0 : i32
    %c0_i32_0 = arith.constant 0 : i32
    %c0_i32_1 = arith.constant 0 : i32
    return %arg0, %c0_i32, %c0_i32_0 : i32, i32, i32
  }
  func.func @transform_2(%arg0: i32) -> (i32, i32) {
    %c0_i32 = arith.constant 0 : i32
    %c0_i32_0 = arith.constant 0 : i32
    %c0_i32_1 = arith.constant 0 : i32
    return %c0_i32, %c0_i32_0 : i32, i32
  }
  func.func @transform_3(%arg0: i32) -> (i32, i32) {
    %c0_i32 = arith.constant 0 : i32
    %c0_i32_0 = arith.constant 0 : i32
    %c0_i32_1 = arith.constant 0 : i32
    return %c0_i32, %c0_i32_0 : i32, i32
  }
  func.func @transform_4(%arg0: i32) -> (i32, i32) {
    %c0_i32 = arith.constant 0 : i32
    %c0_i32_0 = arith.constant 0 : i32
    %c0_i32_1 = arith.constant 0 : i32
    return %c0_i32, %c0_i32_0 : i32, i32
  }
  func.func @transform_5(%arg0: i32) -> (i32, i32) {
    %c0_i32 = arith.constant 0 : i32
    %c0_i32_0 = arith.constant 0 : i32
    %c0_i32_1 = arith.constant 0 : i32
    return %c0_i32, %c0_i32_0 : i32, i32
  }
  func.func @transform_6(%arg0: i32) -> (i32, i32, i32) {
    %c0_i32 = arith.constant 0 : i32
    %c0_i32_0 = arith.constant 0 : i32
    %c0_i32_1 = arith.constant 0 : i32
    return %arg0, %c0_i32, %c0_i32_0 : i32, i32, i32
  }
}

</mosaic_0001>

<llo_original>
// kernel: tpu_custom_call.1
$region0: #{tpu_custom_call.1}
  #allocation0 [shape = 'u32[]', space=smem, size = 0x4, offset = 0x4, fixed_abs, tag = 'smem constant byte address 0x4 - core index']
  #allocation1 [shape = 'u32[144,128]{1,0:T(1,128)}', space=vmem, size = 0x12000, scoped, tag = 'internal scratch']
  %s0 = inlined_call_operand.vmem [shape: f32[2,8,32], index: 0, kind: input, shape index: {}]
  %s1 = inlined_call_operand.vmem [shape: s32[2,8,1], index: 1, kind: input, shape index: {}]
  %s2 = inlined_call_operand.hbm [shape: f32[8,32], index: 2, kind: input, shape index: {}]
  %s3 = inlined_call_operand.vmem [shape: f32[2,32], index: 3, kind: input, shape index: {}]
  %s4 = inlined_call_operand.vmem [shape: f32[1,32], index: 4, kind: input, shape index: {}]
  %s5 = inlined_call_operand.vmem [shape: f32[1,32], index: 5, kind: input, shape index: {}]
  %s6 = inlined_call_operand.hbm [shape: bf16[2,8,32], index: 6, kind: output, shape index: {}]
  %s7 = sld [smem:[#allocation0]]
  $region61: #{tpu_custom_call.1} parent=0
    _
  %s9 = ssub.s32 1, %s7
  %s10 = scalar_select 0, %s9, %s7
  $region1: #{tpu_custom_call.1} parent=0
    #allocation2 [shape = 'u8[4096]{0}', space=vmem, size = 0x1000, scoped, tag = 'input window, operand 2, single buffered']
    #allocation3 [shape = 's32[2]{0}', space=sflag, size = 0x8, scoped, tag = 'scoped memory for tpu_custom_call.1']
    #allocation4 [shape = 's32[2]{0}', space=sflag, size = 0x8, scoped, tag = 'scoped memory for tpu_custom_call.1']
    #allocation5 [shape = 'u8[4096]{0}', space=vmem, size = 0x1000, scoped, tag = 'output window, operand 0']
    %11 = vsyncpa [#allocation3], 0
    %12 = vsyncpa [#allocation4], 0
    %s13 = scalar_lea.sflag [#allocation4], 1
    %14 = vsyncpa %s13, 0
    loop: start=0, step=1, limit=4
    $region2: #{tpu_custom_call.1} parent=1 // loop_pre_header
      _
    $region3: #{tpu_custom_call.1} parent=1 // loop_header
      %s16 = sphi 0, %s20
      %p17 = scmp.ge.s32.totalorder %s16, 4
      %s26 = sphi 0, %s28
      %s29 = sphi 0, %s26
      %s30 = sphi 0, %s29
      %s46 = sphi 0, %s30
      %s52 = sphi 0, %s54
      %s55 = sphi 0, %s52
      %s56 = sphi 0, %s55
      %s72 = sphi 0, %s56
      %s76 = sphi 0, %s76
      %s78 = sphi 0, %s76
      %s79 = sphi 0, %s78
      %s93 = sphi 0, %s79
      %s97 = sphi 0, %s97
      %s99 = sphi 0, %s97
      %s100 = sphi 0, %s99
      %s114 = sphi 0, %s100
      %s118 = sphi 0, %s118
      %s120 = sphi 0, %s118
      %s121 = sphi 0, %s120
      %s135 = sphi 0, %s121
      %s139 = sphi 0, %s139
      %s141 = sphi 0, %s139
      %s142 = sphi 0, %s141
      %s156 = sphi 0, %s142
      %s162 = sphi 0, %s164
      %s165 = sphi 0, %s162
      %s166 = sphi 0, %s165
      %s182 = sphi 0, %s166
    $region4: #{tpu_custom_call.1} parent=1 // loop_header_branch
      %19 = sbr.rel (%p17) target = $region8
    $region5: #{tpu_custom_call.1} parent=1 // loop_body
      %s21 = ssub.s32 %s16, 1
      %s22 = ssub.s32 %s16, 2
      %s23 = sadd.s32 %s16, 1
      %s24 = ssub.s32 %s16, %s23
      %p25 = scmp.eq.s32.totalorder %s24, 0
      %s27 = sadd.s32 %s26, 1
      %s28 = scalar_select %p25, %s26, %s27
      %p31 = pneg %p25
      %p32 = scmp.eq.s32.totalorder %s16, 1
      %p33 = por %p31, %p32
      %p34 = scmp.ne.s32.totalorder %s26, %s29
      %p35 = scmp.eq.s32.totalorder %s16, 0
      %p36 = por %p34, %p35
      %p37 = scmp.ne.s32.totalorder %s26, %s29
      %p38 = scmp.eq.s32.totalorder %s21, 1
      %p39 = por %p37, %p38
      %p40 = scmp.ne.s32.totalorder %s29, %s30
      %p41 = scmp.eq.s32.totalorder %s21, 0
      %p42 = por %p40, %p41
      %p43 = scmp.ne.s32.totalorder %s29, %s30
      %p44 = scmp.eq.s32.totalorder %s22, 1
      %p45 = por %p43, %p44
      %p47 = scmp.ne.s32.totalorder %s30, %s46
      %p48 = scmp.eq.s32.totalorder %s22, 0
      %p49 = por %p47, %p48
      %s50 = ssub.s32 %s16, %s23
      %p51 = scmp.eq.s32.totalorder %s50, 0
      %s53 = sadd.s32 %s52, 1
      %s54 = scalar_select %p51, %s52, %s53
      %p57 = pneg %p51
      %p58 = scmp.eq.s32.totalorder %s16, 1
      %p59 = por %p57, %p58
      %p60 = scmp.ne.s32.totalorder %s52, %s55
      %p61 = scmp.eq.s32.totalorder %s16, 0
      %p62 = por %p60, %p61
      %p63 = scmp.ne.s32.totalorder %s52, %s55
      %p64 = scmp.eq.s32.totalorder %s21, 1
      %p65 = por %p63, %p64
      %p66 = scmp.ne.s32.totalorder %s55, %s56
      %p67 = scmp.eq.s32.totalorder %s21, 0
      %p68 = por %p66, %p67
      %p69 = scmp.ne.s32.totalorder %s55, %s56
      %p70 = scmp.eq.s32.totalorder %s22, 1
      %p71 = por %p69, %p70
      %p73 = scmp.ne.s32.totalorder %s56, %s72
      %p74 = scmp.eq.s32.totalorder %s22, 0
      %p75 = por %p73, %p74
      %s77 = sadd.s32 %s76, 1
      %p80 = scmp.eq.s32.totalorder %s16, 1
      %p81 = scmp.ne.s32.totalorder %s76, %s78
      %p82 = scmp.eq.s32.totalorder %s16, 0
      %p83 = por %p81, %p82
      %p84 = scmp.ne.s32.totalorder %s76, %s78
      %p85 = scmp.eq.s32.totalorder %s21, 1
      %p86 = por %p84, %p85
      %p87 = scmp.ne.s32.totalorder %s78, %s79
      %p88 = scmp.eq.s32.totalorder %s21, 0
      %p89 = por %p87, %p88
      %p90 = scmp.ne.s32.totalorder %s78, %s79
      %p91 = scmp.eq.s32.totalorder %s22, 1
      %p92 = por %p90, %p91
      %p94 = scmp.ne.s32.totalorder %s79, %s93
      %p95 = scmp.eq.s32.totalorder %s22, 0
      %p96 = por %p94, %p95
      %s98 = sadd.s32 %s97, 1
      %p101 = scmp.eq.s32.totalorder %s16, 1
      %p102 = scmp.ne.s32.totalorder %s97, %s99
      %p103 = scmp.eq.s32.totalorder %s16, 0
      %p104 = por %p102, %p103
      %p105 = scmp.ne.s32.totalorder %s97, %s99
      %p106 = scmp.eq.s32.totalorder %s21, 1
      %p107 = por %p105, %p106
      %p108 = scmp.ne.s32.totalorder %s99, %s100
      %p109 = scmp.eq.s32.totalorder %s21, 0
      %p110 = por %p108, %p109
      %p111 = scmp.ne.s32.totalorder %s99, %s100
      %p112 = scmp.eq.s32.totalorder %s22, 1
      %p113 = por %p111, %p112
      %p115 = scmp.ne.s32.totalorder %s100, %s114
      %p116 = scmp.eq.s32.totalorder %s22, 0
      %p117 = por %p115, %p116
      %s119 = sadd.s32 %s118, 1
      %p122 = scmp.eq.s32.totalorder %s16, 1
      %p123 = scmp.ne.s32.totalorder %s118, %s120
      %p124 = scmp.eq.s32.totalorder %s16, 0
      %p125 = por %p123, %p124
      %p126 = scmp.ne.s32.totalorder %s118, %s120
      %p127 = scmp.eq.s32.totalorder %s21, 1
      %p128 = por %p126, %p127
      %p129 = scmp.ne.s32.totalorder %s120, %s121
      %p130 = scmp.eq.s32.totalorder %s21, 0
      %p131 = por %p129, %p130
      %p132 = scmp.ne.s32.totalorder %s120, %s121
      %p133 = scmp.eq.s32.totalorder %s22, 1
      %p134 = por %p132, %p133
      %p136 = scmp.ne.s32.totalorder %s121, %s135
      %p137 = scmp.eq.s32.totalorder %s22, 0
      %p138 = por %p136, %p137
      %s140 = sadd.s32 %s139, 1
      %p143 = scmp.eq.s32.totalorder %s16, 1
      %p144 = scmp.ne.s32.totalorder %s139, %s141
      %p145 = scmp.eq.s32.totalorder %s16, 0
      %p146 = por %p144, %p145
      %p147 = scmp.ne.s32.totalorder %s139, %s141
      %p148 = scmp.eq.s32.totalorder %s21, 1
      %p149 = por %p147, %p148
      %p150 = scmp.ne.s32.totalorder %s141, %s142
      %p151 = scmp.eq.s32.totalorder %s21, 0
      %p152 = por %p150, %p151
      %p153 = scmp.ne.s32.totalorder %s141, %s142
      %p154 = scmp.eq.s32.totalorder %s22, 1
      %p155 = por %p153, %p154
      %p157 = scmp.ne.s32.totalorder %s142, %s156
      %p158 = scmp.eq.s32.totalorder %s22, 0
      %p159 = por %p157, %p158
      %s160 = ssub.s32 %s16, %s23
      %p161 = scmp.eq.s32.totalorder %s160, 0
      %s163 = sadd.s32 %s162, 1
      %s164 = scalar_select %p161, %s162, %s163
      %p167 = pneg %p161
      %p168 = scmp.eq.s32.totalorder %s16, 1
      %p169 = por %p167, %p168
      %p170 = scmp.ne.s32.totalorder %s162, %s165
      %p171 = scmp.eq.s32.totalorder %s16, 0
      %p172 = por %p170, %p171
      %p173 = scmp.ne.s32.totalorder %s162, %s165
      %p174 = scmp.eq.s32.totalorder %s21, 1
      %p175 = por %p173, %p174
      %p176 = scmp.ne.s32.totalorder %s165, %s166
      %p177 = scmp.eq.s32.totalorder %s21, 0
      %p178 = por %p176, %p177
      %p179 = scmp.ne.s32.totalorder %s165, %s166
      %p180 = scmp.eq.s32.totalorder %s22, 1
      %p181 = por %p179, %p180
      %p183 = scmp.ne.s32.totalorder %s166, %s182
      %p184 = scmp.eq.s32.totalorder %s22, 0
      %p185 = por %p183, %p184
      %p186 = scmp.le.s32.totalorder 1, %s16
      %p187 = scmp.lt.s32.totalorder %s16, 3
      %p188 = pnand %p186, %p187
      %p189 = pneg %p188
      // Predicated region
      $region9: #{tpu_custom_call.1} parent=5 // pred_check
        _
      $region10: #{tpu_custom_call.1} parent=5 // pred_check_branch
        %191 = sbr.rel (%p188) target = $region12
      $region11: #{tpu_custom_call.1} parent=5 // pred_region
        %s192 = ssub.s32 %s16, 1
        // Predicated region
        $region13: #{tpu_custom_call.1} parent=11 // pred_check
          %p193 = pneg %p89
        $region14: #{tpu_custom_call.1} parent=11 // pred_check_branch
          %195 = sbr.rel (%p193) target = $region16
        $region15: #{tpu_custom_call.1} parent=11 // pred_region
          %s197 = ssub.s32 128, 128
          %198 = vsyncadd [#allocation3], %s197
          %s200 = sshll.u32 [#allocation2], 4
          %s201 = int_to_ptr.vmem [resolvable:$true] %s200
          %203 = dma.hbm_to_vmem [thread:$0]  %s2, 128, %s201, [#allocation3]
        $region16: #{tpu_custom_call.1} parent=11 // pred_fallthru
          _
        // Predicated region
        $region17: #{tpu_custom_call.1} parent=11 // pred_check
          %p204 = pneg %p110
        $region18: #{tpu_custom_call.1} parent=11 // pred_check_branch
          %206 = sbr.rel (%p204) target = $region20
        $region19: #{tpu_custom_call.1} parent=11 // pred_region
          _
        $region20: #{tpu_custom_call.1} parent=11 // pred_fallthru
          _
        // Predicated region
        $region21: #{tpu_custom_call.1} parent=11 // pred_check
          %p207 = pneg %p131
        $region22: #{tpu_custom_call.1} parent=11 // pred_check_branch
          %209 = sbr.rel (%p207) target = $region24
        $region23: #{tpu_custom_call.1} parent=11 // pred_region
          _
        $region24: #{tpu_custom_call.1} parent=11 // pred_fallthru
          _
        // Predicated region
        $region25: #{tpu_custom_call.1} parent=11 // pred_check
          %p210 = pneg %p152
        $region26: #{tpu_custom_call.1} parent=11 // pred_check_branch
          %212 = sbr.rel (%p210) target = $region28
        $region27: #{tpu_custom_call.1} parent=11 // pred_region
          _
        $region28: #{tpu_custom_call.1} parent=11 // pred_fallthru
          _
      $region12: #{tpu_custom_call.1} parent=5 // pred_fallthru
        _
      %p213 = scmp.lt.s32.totalorder %s16, 2
      // Predicated region
      $region29: #{tpu_custom_call.1} parent=5 // pred_check
        %p214 = pneg %p213
      $region30: #{tpu_custom_call.1} parent=5 // pred_check_branch
        %216 = sbr.rel (%p214) target = $region32
      $region31: #{tpu_custom_call.1} parent=5 // pred_region
        // Predicated region
        $region33: #{tpu_custom_call.1} parent=31 // pred_check
          %p217 = pneg %p36
        $region34: #{tpu_custom_call.1} parent=31 // pred_check_branch
          %219 = sbr.rel (%p217) target = $region36
        $region35: #{tpu_custom_call.1} parent=31 // pred_region
          %p220 = scmp.lt.s32.totalorder %s16, 1
          %s221 = scalar_select %p220, %s16, 1
          %s222 = smul.addr %s221, 8
          %s223 = scalar_lea.vmem %s0, %s222
        $region36: #{tpu_custom_call.1} parent=31 // pred_fallthru
          _
        // Predicated region
        $region37: #{tpu_custom_call.1} parent=31 // pred_check
          %p224 = pneg %p62
        $region38: #{tpu_custom_call.1} parent=31 // pred_check_branch
          %226 = sbr.rel (%p224) target = $region40
        $region39: #{tpu_custom_call.1} parent=31 // pred_region
          %p227 = scmp.lt.s32.totalorder %s16, 1
          %s228 = scalar_select %p227, %s16, 1
          %s229 = smul.addr %s228, 8
          %s230 = scalar_lea.vmem %s1, %s229
        $region40: #{tpu_custom_call.1} parent=31 // pred_fallthru
          _
      $region32: #{tpu_custom_call.1} parent=5 // pred_fallthru
        _
      %p231 = scmp.le.s32.totalorder 1, %s16
      %p232 = scmp.lt.s32.totalorder %s16, 3
      %p233 = pnand %p231, %p232
      %p234 = pneg %p233
      // Predicated region
      $region41: #{tpu_custom_call.1} parent=5 // pred_check
        _
      $region42: #{tpu_custom_call.1} parent=5 // pred_check_branch
        %236 = sbr.rel (%p233) target = $region44
      $region43: #{tpu_custom_call.1} parent=5 // pred_region
        %s237 = ssub.s32 %s16, 1
        // Predicated region
        $region45: #{tpu_custom_call.1} parent=43 // pred_check
          %p238 = pneg %p89
        $region46: #{tpu_custom_call.1} parent=43 // pred_check_branch
          %240 = sbr.rel (%p238) target = $region48
        $region47: #{tpu_custom_call.1} parent=43 // pred_region
          %241 = dma.done [#allocation3], 128
        $region48: #{tpu_custom_call.1} parent=43 // pred_fallthru
          _
        %p242 = scmp.lt.s32.totalorder %s21, 1
        %s243 = scalar_select %p242, %s21, 1
        %s244 = smul.addr %s243, 8
        %s245 = scalar_lea.vmem %s0, %s244
        %p246 = pneg %p42
        %p247 = pneg %p39
        %p248 = scmp.lt.s32.totalorder %s21, 1
        %s249 = scalar_select %p248, %s21, 1
        %s250 = smul.addr %s249, 8
        %s251 = scalar_lea.vmem %s1, %s250
        %p252 = pneg %p68
        %p253 = pneg %p65
        %p254 = pneg %p89
        %p255 = pneg %p86
        %p256 = pneg %p110
        %p257 = pneg %p107
        %p258 = pneg %p131
        %p259 = pneg %p128
        %p260 = pneg %p152
        %p261 = pneg %p149
        %p262 = pneg %p178
        %p263 = pneg %p175
        %s264 = sand.u32 %s165, 1
        %s265 = scalar_lea.sflag [#allocation4], %s264
        %s266 = sand.u32 %s165, 1
        %s267 = smul.addr %s266, 4
        %s268 = scalar_lea.vmem [#allocation5], %s267
        %p269 = scmp.lt.s32.totalorder %s21, 1
        %s270 = scalar_select %p269, %s21, 1
        %s271 = smul.addr %s270, 8
        %s272 = scalar_lea.vmem %s0, %s271
        %p273 = scmp.lt.s32.totalorder %s21, 1
        %s274 = scalar_select %p273, %s21, 1
        %s275 = smul.addr %s274, 8
        %s276 = scalar_lea.vmem %s1, %s275
        %v277 = vld [vmem:[%s272] sm:$0xff]
        %v278 = vld [vmem:[#allocation2] sm:$0xff]
        %v279 = vadd.f32 %v277, %v278
        %v280 = vld [vmem:[%s276] sm:$0xff]
        %vm281 = vcmp.eq.s32.totalorder %v280, 0
        %v282 = vld [vmem:[%s3] sm:$0x1]
        %v283 = vsel %vm281, 1, 0
        %284 = vset.pattern.permute.xlu0 0
        %285 = vperm.xlu0 %284, %v283
        %v286 = vpop.permute.xlu0 %285
        %vm287 = vcmp.eq.s32.totalorder %v286, 1
        %v288 = vlaneseq
        %v289 = vshrl.u32 %v288, 7
        %v290 = vsub.s32 0, %v289
        %v291 = vrot.slane %v282, %v290
        %v292 = vsel %vm287, %v291, 0.0
        %v293 = vadd.f32 %v279, %v292
        %vm294 = vcmp.eq.s32.totalorder %v280, 1
        %v295 = vld [vmem:[%s3 + $0x1] sm:$0x1]
        %v296 = vsel %vm294, 1, 0
        %297 = vset.pattern.permute.xlu0 0
        %298 = vperm.xlu0 %297, %v296
        %v299 = vpop.permute.xlu0 %298
        %vm300 = vcmp.eq.s32.totalorder %v299, 1
        %v301 = vlaneseq
        %v302 = vshrl.u32 %v301, 7
        %v303 = vsub.s32 0, %v302
        %v304 = vrot.slane %v295, %v303
        %v305 = vsel %vm300, %v304, 0.0
        %v306 = vadd.f32 %v293, %v305
        %vm307 = vcmask 261120
        %v308 = vsel %vm307, %v306, 0.0
        %309 = vadd.xlane.f32.xlu0 %v308
        %v310 = vpop.xlane.xlu0 %309
        %v311 = vrcp.pop 32.0
        %v312 = vmul.f32 %v310, %v311
        %v313 = vsub.f32 %v306, %v312
        %v314 = vmul.f32 %v313, %v313
        %v315 = vsel %vm307, %v314, 0.0
        %316 = vadd.xlane.f32.xlu0 %v315
        %v317 = vpop.xlane.xlu0 %316
        %v318 = vmul.f32 %v317, %v311
        %v319 = vadd.f32 %v318, 1e-12
        %v320 = vrsqrt.pop %v319
        %v321 = vmul.f32 %v313, %v320
        %v322 = vld [vmem:[%s4] sm:$0x1]
        %v324 = vlaneseq
        %v325 = vshrl.u32 %v324, 7
        %v326 = vsub.s32 0, %v325
        %v327 = vrot.slane %v322, %v326
        %v329 = vmul.f32 %v321, %v327
        %v330 = vld [vmem:[%s5] sm:$0x1]
        %v332 = vlaneseq
        %v333 = vshrl.u32 %v332, 7
        %v334 = vsub.s32 0, %v333
        %v335 = vrot.slane %v330, %v334
        %v337 = vadd.f32 %v329, %v335
        %v338 = vpack.c.bf16 %v337, %v337
        %vm339 = vcmask 257024
        %340 = vst.msk [vmem:[%s268] sm:$0xf] %vm339, %v338
        %s341 = sand.u32 %s165, 1
        %s342 = scalar_lea.sflag [#allocation4], %s341
        %s343 = sand.u32 %s165, 1
        %s344 = smul.addr %s343, 4
        %s345 = scalar_lea.vmem [#allocation5], %s344
        // Predicated region
        $region49: #{tpu_custom_call.1} parent=43 // pred_check
          %p346 = pneg %p175
        $region50: #{tpu_custom_call.1} parent=43 // pred_check_branch
          %348 = sbr.rel (%p346) target = $region52
        $region51: #{tpu_custom_call.1} parent=43 // pred_region
          %s350 = ssub.s32 64, 64
          %351 = vsyncadd %s342, %s350
          %s352 = smul.addr %s21, 64
          %s353 = scalar_lea.hbm %s6, %s352
          %s355 = sshll.u32 %s345, 4
          %s356 = int_to_ptr.vmem [resolvable:$true] %s355
          %358 = dma.vmem_to_hbm [thread:$0]  %s356, 64, %s353, %s342
        $region52: #{tpu_custom_call.1} parent=43 // pred_fallthru
          _
      $region44: #{tpu_custom_call.1} parent=5 // pred_fallthru
        _
      %p359 = scmp.le.s32.totalorder 2, %s16
      // Predicated region
      $region53: #{tpu_custom_call.1} parent=5 // pred_check
        %p360 = pneg %p359
      $region54: #{tpu_custom_call.1} parent=5 // pred_check_branch
        %362 = sbr.rel (%p360) target = $region56
      $region55: #{tpu_custom_call.1} parent=5 // pred_region
        %s363 = ssub.s32 %s16, 2
        // Predicated region
        $region57: #{tpu_custom_call.1} parent=55 // pred_check
          %p364 = pneg %p181
        $region58: #{tpu_custom_call.1} parent=55 // pred_check_branch
          %366 = sbr.rel (%p364) target = $region60
        $region59: #{tpu_custom_call.1} parent=55 // pred_region
          %s367 = sand.u32 %s166, 1
          %s368 = scalar_lea.sflag [#allocation4], %s367
          %s369 = sand.u32 %s166, 1
          %s370 = smul.addr %s369, 4
          %s371 = scalar_lea.vmem [#allocation5], %s370
          %372 = dma.done %s368, 64
        $region60: #{tpu_custom_call.1} parent=55 // pred_fallthru
          _
      $region56: #{tpu_custom_call.1} parent=5 // pred_fallthru
        _
    $region6: #{tpu_custom_call.1} parent=1 // loop_footer
      %s20 = sadd.s32 1, %s16
    $region7: #{tpu_custom_call.1} parent=1 // loop_footer_branch
      %15 = sbr.rel target = $region3
    $region8: #{tpu_custom_call.1} parent=1 // loop_exit
      _
    %373 = vsyncpa [#allocation3], 1
    %s374 = scalar_lea.sflag [#allocation3], 1
    %375 = vsyncpa %s374, 1
    %376 = vsyncpa [#allocation4], 1
    %s377 = scalar_lea.sflag [#allocation4], 1
    %378 = vsyncpa %s377, 1

</llo_original>
